<compile_context>
chip_gen: v6e
topology: v6e:2x2x1
jax: 0.10.0
libtpu: 0.0.40
codegen_flags: <defaults>
</compile_context>

<pallas_src>
import functools

import jax
import jax.numpy as jnp
from jax.experimental import pallas as pl
from jax.experimental.pallas import tpu as pltpu


def _temporal_block_kernel(x_ref, w1_ref, b1_ref, w2_ref, b2_ref,
                           wd_ref, bd_ref, o_ref, *, L, K, dilation):
    """One batch-tile per grid step.

    x_ref  : (nb, L, C)      bf16, channel-padded input (no time padding)
    w1_ref : (K*C, C)        bf16, tap-major flattened conv1 weights
    w2_ref : (K*C, C)        bf16, tap-major flattened conv2 weights
    wd_ref : (C, C)          bf16, 1x1 downsample conv
    b*_ref : (1, C)          f32 biases
    o_ref  : (nb, L, C)      f32 output
    """
    nb = x_ref.shape[0]
    c = x_ref.shape[2]

    x = x_ref[...]                                   # (nb, L, C) bf16
    x2d = x.reshape(nb * L, c)

    def causal_im2col(a):
        # a: (nb, L, C) -> (nb*L, K*C); tap k is a shifted back by (K-1-k)*d
        # in time, with zero fill (causal padding done in registers).
        pieces = []
        for k in range(K):                           # static -> unrolled
            shift = (K - 1 - k) * dilation
            if shift == 0:
                pieces.append(a)
            elif shift >= L:
                pieces.append(jnp.zeros((nb, L, c), a.dtype))
            else:
                zeros = jnp.zeros((nb, shift, c), a.dtype)
                pieces.append(jnp.concatenate([zeros, a[:, :L - shift, :]],
                                              axis=1))
        slab = jnp.concatenate(pieces, axis=-1)      # (nb, L, K*C)
        return slab.reshape(nb * L, K * c)

    # ---- conv1 (dilated, causal) + ReLU: one fused MXU matmul
    h1 = jnp.dot(causal_im2col(x), w1_ref[...],
                 preferred_element_type=jnp.float32) + b1_ref[...]
    h1 = jnp.maximum(h1, 0.0)                        # (nb*L, C) f32
    # TODO(synk): nn.Dropout is identity in eval mode; training-mode dropout
    # (pltpu.prng_random_bits mask) is not implemented here.

    # ---- conv2 (dilated, causal) + ReLU
    h1_b = h1.reshape(nb, L, c).astype(x.dtype)      # bf16 for the MXU
    h2 = jnp.dot(causal_im2col(h1_b), w2_ref[...],
                 preferred_element_type=jnp.float32) + b2_ref[...]
    h2 = jnp.maximum(h2, 0.0)

    # ---- residual (1x1 downsample conv) + final ReLU
    res = jnp.dot(x2d, wd_ref[...],
                  preferred_element_type=jnp.float32) + bd_ref[...]
    o_ref[...] = jnp.maximum(h2 + res, 0.0).reshape(nb, L, c)


def temporal_block(x_ncl, w1, b1, w2, b2, wd, bd, *, kernel_size, dilation):
    """x_ncl: (N, C_in, L) f32 (PyTorch NCL). Returns (N, C_out, L) f32.

    w1: (K, C_in, C_out), w2: (K, C_out, C_out), b1/b2: (C_out,)
    wd: (C_in, C_out) or None (None => identity residual, as PyTorch when
        in_channels == out_channels), bd: (C_out,) or None.
    """
    N, c_in, L = x_ncl.shape
    K = kernel_size
    c_out = w1.shape[2]

    if wd is None:
        assert c_in == c_out, "identity residual requires c_in == c_out"
        wd = jnp.eye(c_in, dtype=jnp.float32)
    if bd is None:
        bd = jnp.zeros((c_out,), jnp.float32)

    # Lane-dense channel padding (multiple of 128 lanes). Zero-padded channels
    # contribute exactly zero through convs / bias / relu and are sliced off.
    C = 128 * pl.cdiv(max(c_in, c_out, 1), 128)

    x_nlc = jnp.transpose(x_ncl, (0, 2, 1))                       # (N, L, C_in)
    x_p = jnp.pad(x_nlc, ((0, 0), (0, 0), (0, C - c_in))).astype(jnp.bfloat16)

    # Weights: pad channels to C, flatten taps (tap-major, channel-minor) so
    # they match the in-kernel im2col lane order. bf16 for the MXU.
    w1_flat = jnp.pad(w1, ((0, 0), (0, C - c_in), (0, C - c_out))
                      ).reshape(K * C, C).astype(jnp.bfloat16)
    w2_flat = jnp.pad(w2, ((0, 0), (0, C - c_out), (0, C - c_out))
                      ).reshape(K * C, C).astype(jnp.bfloat16)
    wd_p = jnp.pad(wd, ((0, C - c_in), (0, C - c_out))).astype(jnp.bfloat16)
    b1_p = jnp.pad(b1, (0, C - c_out)).reshape(1, C).astype(jnp.float32)
    b2_p = jnp.pad(b2, (0, C - c_out)).reshape(1, C).astype(jnp.float32)
    bd_p = jnp.pad(bd, (0, C - c_out)).reshape(1, C).astype(jnp.float32)

    # Batch tile: target >=128 rows of matmul M per step, but keep >=2 grid
    # steps when N allows (so both v7x TensorCores get work).
    nb = max(1, min(N // 2 if N >= 2 else N, pl.cdiv(128, max(L, 1))))
    while N % nb:
        nb -= 1
    grid_n = N // nb

    kernel = functools.partial(_temporal_block_kernel,
                               L=L, K=K, dilation=dilation)

    out_nlc = pl.pallas_call(
        kernel,
        out_shape=jax.ShapeDtypeStruct((N, L, C), jnp.float32),
        grid_spec=pltpu.PrefetchScalarGridSpec(
            num_scalar_prefetch=0,
            grid=(grid_n,),
            in_specs=[
                pl.BlockSpec((nb, L, C), lambda n: (n, 0, 0)),
                pl.BlockSpec((K * C, C), lambda n: (0, 0)),
                pl.BlockSpec((1, C), lambda n: (0, 0)),
                pl.BlockSpec((K * C, C), lambda n: (0, 0)),
                pl.BlockSpec((1, C), lambda n: (0, 0)),
                pl.BlockSpec((C, C), lambda n: (0, 0)),
                pl.BlockSpec((1, C), lambda n: (0, 0)),
            ],
            out_specs=pl.BlockSpec((nb, L, C), lambda n: (n, 0, 0)),
        ),
        compiler_params=pltpu.CompilerParams(
            dimension_semantics=("parallel",)),
    )(x_p, w1_flat, b1_p, w2_flat, b2_p, wd_p, bd_p)

    # Drop channel padding, back to PyTorch NCL layout.
    # TODO(synk): if L is ever tiled with a grid axis, the (K-1)*dilation
    # causal halo must be fetched explicitly (pl.Element / manual DMA).
    return jnp.transpose(out_nlc[:, :, :c_out], (0, 2, 1))


def _reference(x_ncl, w1, b1, w2, b2, wd, bd, *, kernel_size, dilation):
    """Pure-JAX reference mirroring the kernel's bf16-matmul / f32-accum math."""
    K, d = kernel_size, dilation
    x = jnp.transpose(x_ncl, (0, 2, 1))                 # (N, L, C_in)
    L = x.shape[1]

    def causal_conv(inp_b, w, b):
        out = b[None, None, :].astype(jnp.float32)
        for k in range(K):
            shift = (K - 1 - k) * d
            ip = jnp.pad(inp_b, ((0, 0), (shift, 0), (0, 0)))[:, :L, :]
            out = out + jnp.einsum("nlc,cd->nld", ip, w[k].astype(jnp.bfloat16),
                                   preferred_element_type=jnp.float32)
        return out

    xb = x.astype(jnp.bfloat16)
    h1 = jax.nn.relu(causal_conv(xb, w1, b1))
    h2 = jax.nn.relu(causal_conv(h1.astype(jnp.bfloat16), w2, b2))
    res = jnp.einsum("nlc,cd->nld", xb, wd.astype(jnp.bfloat16),
                     preferred_element_type=jnp.float32) + bd[None, None, :]
    y = jax.nn.relu(h2 + res)
    return jnp.transpose(y, (0, 2, 1))


if __name__ == "__main__":
    # TemporalBlock hyperparameters (small toy shapes, stride=1 as in TCNs).
    N, C_IN, C_OUT, L = 2, 4, 8, 16
    KERNEL_SIZE, STRIDE, DILATION, DROPOUT = 3, 1, 2, 0.1

    key = jax.random.PRNGKey(0)
    ks = jax.random.split(key, 7)
    x = jax.random.normal(ks[0], (N, C_IN, L), jnp.float32)          # NCL
    # Conv1d weights: PyTorch (C_out, C_in, K) stored here as (K, C_in, C_out)
    w1 = 0.3 * jax.random.normal(ks[1], (KERNEL_SIZE, C_IN, C_OUT), jnp.float32)
    b1 = 0.1 * jax.random.normal(ks[2], (C_OUT,), jnp.float32)
    w2 = 0.3 * jax.random.normal(ks[3], (KERNEL_SIZE, C_OUT, C_OUT), jnp.float32)
    b2 = 0.1 * jax.random.normal(ks[4], (C_OUT,), jnp.float32)
    wd = 0.3 * jax.random.normal(ks[5], (C_IN, C_OUT), jnp.float32)  # 1x1 downsample
    bd = 0.1 * jax.random.normal(ks[6], (C_OUT,), jnp.float32)

    y = temporal_block(x, w1, b1, w2, b2, wd, bd,
                       kernel_size=KERNEL_SIZE, dilation=DILATION)
    y = jax.block_until_ready(y)

    y_ref = _reference(x, w1, b1, w2, b2, wd, bd,
                       kernel_size=KERNEL_SIZE, dilation=DILATION)
    assert y.shape == (N, C_OUT, L)
    assert jnp.allclose(y, y_ref, atol=1e-3, rtol=1e-3), "mismatch vs reference"
    print("KERNEL_OK")
</pallas_src>

<mosaic_0001>
module attributes {stable_mosaic.version = 11 : i64} {
  func.func @_temporal_block_kernel(%arg0: i32, %arg1: memref<1x16x128xbf16, #tpu.memory_space<vmem>>, %arg2: memref<384x128xbf16, #tpu.memory_space<vmem>>, %arg3: memref<1x128xf32, #tpu.memory_space<vmem>>, %arg4: memref<384x128xbf16, #tpu.memory_space<vmem>>, %arg5: memref<1x128xf32, #tpu.memory_space<vmem>>, %arg6: memref<128x128xbf16, #tpu.memory_space<vmem>>, %arg7: memref<1x128xf32, #tpu.memory_space<vmem>>, %arg8: memref<1x16x128xf32, #tpu.memory_space<vmem>>) attributes {dimension_semantics = [#tpu.dimension_semantics<parallel>], iteration_bounds = array<i64: 2>, scalar_prefetch = 0 : i64, scratch_operands = 0 : i64, tpu.core_type = #tpu.core_type<tc>, window_params = [{transform_indices = @transform_0, window_bounds = array<i64: 1, 16, 128>}, {pipeline_mode = #tpu.pipeline_mode<synchronous>, transform_indices = @transform_1, window_bounds = array<i64: 384, 128>}, {pipeline_mode = #tpu.pipeline_mode<synchronous>, transform_indices = @transform_2, window_bounds = array<i64: 1, 128>}, {pipeline_mode = #tpu.pipeline_mode<synchronous>, transform_indices = @transform_3, window_bounds = array<i64: 384, 128>}, {pipeline_mode = #tpu.pipeline_mode<synchronous>, transform_indices = @transform_4, window_bounds = array<i64: 1, 128>}, {pipeline_mode = #tpu.pipeline_mode<synchronous>, transform_indices = @transform_5, window_bounds = array<i64: 128, 128>}, {pipeline_mode = #tpu.pipeline_mode<synchronous>, transform_indices = @transform_6, window_bounds = array<i64: 1, 128>}, {transform_indices = @transform_7, window_bounds = array<i64: 1, 16, 128>}]} {
    %c0 = arith.constant 0 : index
    %c0_0 = arith.constant 0 : index
    %c0_1 = arith.constant 0 : index
    %0 = vector.load %arg1[%c0, %c0_0, %c0_1] : memref<1x16x128xbf16, #tpu.memory_space<vmem>>, vector<1x16x128xbf16>
    %1 = vector.shape_cast %0 : vector<1x16x128xbf16> to vector<16x128xbf16>
    %cst = arith.constant 0.000000e+00 : bf16
    %2 = vector.broadcast %cst : bf16 to vector<1x4x128xbf16>
    %3 = vector.extract_strided_slice %0 {offsets = [0, 0, 0], sizes = [1, 12, 128], strides = [1, 1, 1]} : vector<1x16x128xbf16> to vector<1x12x128xbf16>
    %4 = tpu.concatenate %2, %3 in 1 : vector<1x4x128xbf16>, vector<1x12x128xbf16> -> vector<1x16x128xbf16>
    %cst_2 = arith.constant 0.000000e+00 : bf16
    %5 = vector.broadcast %cst_2 : bf16 to vector<1x2x128xbf16>
    %6 = vector.extract_strided_slice %0 {offsets = [0, 0, 0], sizes = [1, 14, 128], strides = [1, 1, 1]} : vector<1x16x128xbf16> to vector<1x14x128xbf16>
    %7 = tpu.concatenate %5, %6 in 1 : vector<1x2x128xbf16>, vector<1x14x128xbf16> -> vector<1x16x128xbf16>
    %8 = tpu.concatenate %4, %7, %0 in 2 : vector<1x16x128xbf16>, vector<1x16x128xbf16>, vector<1x16x128xbf16> -> vector<1x16x384xbf16>
    %9 = vector.shape_cast %8 : vector<1x16x384xbf16> to vector<16x384xbf16>
    %c0_3 = arith.constant 0 : index
    %c0_4 = arith.constant 0 : index
    %10 = vector.load %arg2[%c0_3, %c0_4] : memref<384x128xbf16, #tpu.memory_space<vmem>>, vector<384x128xbf16>
    %cst_5 = arith.constant dense<0.000000e+00> : vector<16x128xf32>
    %11 = tpu.matmul %9, %10, %cst_5 {dimension_numbers = #tpu.dot_dimension_numbers<[1], [0], [0], [1], [0, 0, 1, 1], [], []>} : vector<16x384xbf16>, vector<384x128xbf16>, vector<16x128xf32> -> vector<16x128xf32>
    %c0_6 = arith.constant 0 : index
    %c0_7 = arith.constant 0 : index
    %12 = vector.load %arg3[%c0_6, %c0_7] : memref<1x128xf32, #tpu.memory_space<vmem>>, vector<1x128xf32>
    %13 = vector.broadcast %12 : vector<1x128xf32> to vector<16x128xf32>
    %14 = arith.addf %11, %13 : vector<16x128xf32>
    %cst_8 = arith.constant 0.000000e+00 : f32
    %15 = vector.broadcast %cst_8 : f32 to vector<16x128xf32>
    %16 = arith.maximumf %14, %15 : vector<16x128xf32>
    %17 = vector.shape_cast %16 : vector<16x128xf32> to vector<1x16x128xf32>
    %18 = arith.truncf %17 : vector<1x16x128xf32> to vector<1x16x128xbf16>
    %cst_9 = arith.constant 0.000000e+00 : bf16
    %19 = vector.broadcast %cst_9 : bf16 to vector<1x4x128xbf16>
    %20 = vector.extract_strided_slice %18 {offsets = [0, 0, 0], sizes = [1, 12, 128], strides = [1, 1, 1]} : vector<1x16x128xbf16> to vector<1x12x128xbf16>
    %21 = tpu.concatenate %19, %20 in 1 : vector<1x4x128xbf16>, vector<1x12x128xbf16> -> vector<1x16x128xbf16>
    %cst_10 = arith.constant 0.000000e+00 : bf16
    %22 = vector.broadcast %cst_10 : bf16 to vector<1x2x128xbf16>
    %23 = vector.extract_strided_slice %18 {offsets = [0, 0, 0], sizes = [1, 14, 128], strides = [1, 1, 1]} : vector<1x16x128xbf16> to vector<1x14x128xbf16>
    %24 = tpu.concatenate %22, %23 in 1 : vector<1x2x128xbf16>, vector<1x14x128xbf16> -> vector<1x16x128xbf16>
    %25 = tpu.concatenate %21, %24, %18 in 2 : vector<1x16x128xbf16>, vector<1x16x128xbf16>, vector<1x16x128xbf16> -> vector<1x16x384xbf16>
    %26 = vector.shape_cast %25 : vector<1x16x384xbf16> to vector<16x384xbf16>
    %c0_11 = arith.constant 0 : index
    %c0_12 = arith.constant 0 : index
    %27 = vector.load %arg4[%c0_11, %c0_12] : memref<384x128xbf16, #tpu.memory_space<vmem>>, vector<384x128xbf16>
    %cst_13 = arith.constant dense<0.000000e+00> : vector<16x128xf32>
    %28 = tpu.matmul %26, %27, %cst_13 {dimension_numbers = #tpu.dot_dimension_numbers<[1], [0], [0], [1], [0, 0, 1, 1], [], []>} : vector<16x384xbf16>, vector<384x128xbf16>, vector<16x128xf32> -> vector<16x128xf32>
    %c0_14 = arith.constant 0 : index
    %c0_15 = arith.constant 0 : index
    %29 = vector.load %arg5[%c0_14, %c0_15] : memref<1x128xf32, #tpu.memory_space<vmem>>, vector<1x128xf32>
    %30 = vector.broadcast %29 : vector<1x128xf32> to vector<16x128xf32>
    %31 = arith.addf %28, %30 : vector<16x128xf32>
    %cst_16 = arith.constant 0.000000e+00 : f32
    %32 = vector.broadcast %cst_16 : f32 to vector<16x128xf32>
    %33 = arith.maximumf %31, %32 : vector<16x128xf32>
    %c0_17 = arith.constant 0 : index
    %c0_18 = arith.constant 0 : index
    %34 = vector.load %arg6[%c0_17, %c0_18] : memref<128x128xbf16, #tpu.memory_space<vmem>>, vector<128x128xbf16>
    %cst_19 = arith.constant dense<0.000000e+00> : vector<16x128xf32>
    %35 = tpu.matmul %1, %34, %cst_19 {dimension_numbers = #tpu.dot_dimension_numbers<[1], [0], [0], [1], [0, 0, 1, 1], [], []>} : vector<16x128xbf16>, vector<128x128xbf16>, vector<16x128xf32> -> vector<16x128xf32>
    %c0_20 = arith.constant 0 : index
    %c0_21 = arith.constant 0 : index
    %36 = vector.load %arg7[%c0_20, %c0_21] : memref<1x128xf32, #tpu.memory_space<vmem>>, vector<1x128xf32>
    %37 = vector.broadcast %36 : vector<1x128xf32> to vector<16x128xf32>
    %38 = arith.addf %35, %37 : vector<16x128xf32>
    %39 = arith.addf %33, %38 : vector<16x128xf32>
    %cst_22 = arith.constant 0.000000e+00 : f32
    %40 = vector.broadcast %cst_22 : f32 to vector<16x128xf32>
    %41 = arith.maximumf %39, %40 : vector<16x128xf32>
    %42 = vector.shape_cast %41 : vector<16x128xf32> to vector<1x16x128xf32>
    %c0_23 = arith.constant 0 : index
    %c0_24 = arith.constant 0 : index
    %c0_25 = arith.constant 0 : index
    %43 = vector.load %arg8[%c0_23, %c0_24, %c0_25] : memref<1x16x128xf32, #tpu.memory_space<vmem>>, vector<1x16x128xf32>
    tpu.vector_store %arg8[%c0_23, %c0_24, %c0_25], %42 {strides = array<i32>} : memref<1x16x128xf32, #tpu.memory_space<vmem>>, vector<1x16x128xf32>,
    return
  }
  func.func @transform_0(%arg0: i32) -> (i32, i32, i32) {
    %c0_i32 = arith.constant 0 : i32
    %c0_i32_0 = arith.constant 0 : i32
    %c0_i32_1 = arith.constant 0 : i32
    return %arg0, %c0_i32, %c0_i32_0 : i32, i32, i32
  }
  func.func @transform_1(%arg0: i32) -> (i32, i32) {
    %c0_i32 = arith.constant 0 : i32
    %c0_i32_0 = arith.constant 0 : i32
    %c0_i32_1 = arith.constant 0 : i32
    return %c0_i32, %c0_i32_0 : i32, i32
  }
  func.func @transform_2(%arg0: i32) -> (i32, i32) {
    %c0_i32 = arith.constant 0 : i32
    %c0_i32_0 = arith.constant 0 : i32
    %c0_i32_1 = arith.constant 0 : i32
    return %c0_i32, %c0_i32_0 : i32, i32
  }
  func.func @transform_3(%arg0: i32) -> (i32, i32) {
    %c0_i32 = arith.constant 0 : i32
    %c0_i32_0 = arith.constant 0 : i32
    %c0_i32_1 = arith.constant 0 : i32
    return %c0_i32, %c0_i32_0 : i32, i32
  }
  func.func @transform_4(%arg0: i32) -> (i32, i32) {
    %c0_i32 = arith.constant 0 : i32
    %c0_i32_0 = arith.constant 0 : i32
    %c0_i32_1 = arith.constant 0 : i32
    return %c0_i32, %c0_i32_0 : i32, i32
  }
  func.func @transform_5(%arg0: i32) -> (i32, i32) {
    %c0_i32 = arith.constant 0 : i32
    %c0_i32_0 = arith.constant 0 : i32
    %c0_i32_1 = arith.constant 0 : i32
    return %c0_i32, %c0_i32_0 : i32, i32
  }
  func.func @transform_6(%arg0: i32) -> (i32, i32) {
    %c0_i32 = arith.constant 0 : i32
    %c0_i32_0 = arith.constant 0 : i32
    %c0_i32_1 = arith.constant 0 : i32
    return %c0_i32, %c0_i32_0 : i32, i32
  }
  func.func @transform_7(%arg0: i32) -> (i32, i32, i32) {
    %c0_i32 = arith.constant 0 : i32
    %c0_i32_0 = arith.constant 0 : i32
    %c0_i32_1 = arith.constant 0 : i32
    return %arg0, %c0_i32, %c0_i32_0 : i32, i32, i32
  }
}

</mosaic_0001>

<llo_original>
// kernel: tpu_custom_call.1
$region0: #{tpu_custom_call.1}
  #allocation0 [shape = 'u32[]', space=smem, size = 0x4, offset = 0x4, fixed_abs, tag = 'smem constant byte address 0x4 - core index']
  #allocation1 [shape = 'u32[144,128]{1,0:T(1,128)}', space=vmem, size = 0x12000, scoped, tag = 'internal scratch']
  %s0 = inlined_call_operand.hbm [shape: bf16[2,16,128], index: 0, kind: input, shape index: {}]
  %s1 = inlined_call_operand.hbm [shape: bf16[384,128], index: 1, kind: input, shape index: {}]
  %s2 = inlined_call_operand.vmem [shape: f32[1,128], index: 2, kind: input, shape index: {}]
  %s3 = inlined_call_operand.hbm [shape: bf16[384,128], index: 3, kind: input, shape index: {}]
  %s4 = inlined_call_operand.vmem [shape: f32[1,128], index: 4, kind: input, shape index: {}]
  %s5 = inlined_call_operand.hbm [shape: bf16[128,128], index: 5, kind: input, shape index: {}]
  %s6 = inlined_call_operand.vmem [shape: f32[1,128], index: 6, kind: input, shape index: {}]
  %s7 = inlined_call_operand.hbm [shape: f32[2,16,128], index: 7, kind: output, shape index: {}]
  %s8 = sld [smem:[#allocation0]]
  $region77: #{tpu_custom_call.1} parent=0
    _
  %s10 = ssub.s32 1, %s8
  %s11 = scalar_select 0, %s10, %s8
  $region1: #{tpu_custom_call.1} parent=0
    #allocation2 [shape = 'u8[8192]{0}', space=vmem, size = 0x2000, scoped, tag = 'input window, operand 0']
    #allocation3 [shape = 's32[2]{0}', space=sflag, size = 0x8, scoped, tag = 'scoped memory for tpu_custom_call.1']
    #allocation4 [shape = 's32[2]{0}', space=sflag, size = 0x8, scoped, tag = 'scoped memory for tpu_custom_call.1']
    #allocation5 [shape = 'u8[98304]{0}', space=vmem, size = 0x18000, scoped, tag = 'input window, operand 1, single buffered']
    #allocation6 [shape = 's32[1]{0}', space=sflag, size = 0x4, scoped, tag = 'scoped memory for tpu_custom_call.1']
    #allocation7 [shape = 'u8[98304]{0}', space=vmem, size = 0x18000, scoped, tag = 'input window, operand 3, single buffered']
    #allocation8 [shape = 'u8[32768]{0}', space=vmem, size = 0x8000, scoped, tag = 'input window, operand 5, single buffered']
    #allocation9 [shape = 's32[1]{0}', space=sflag, size = 0x4, scoped, tag = 'scoped memory for tpu_custom_call.1']
    #allocation10 [shape = 'u8[16384]{0}', space=vmem, size = 0x4000, scoped, tag = 'output window, operand 0']
    %12 = vsyncpa [#allocation3], 0
    %s13 = scalar_lea.sflag [#allocation3], 1
    %14 = vsyncpa %s13, 0
    %15 = vsyncpa [#allocation6], 0
    %16 = vsyncpa [#allocation9], 0
    %17 = vsyncpa [#allocation4], 0
    %s18 = scalar_lea.sflag [#allocation4], 1
    %19 = vsyncpa %s18, 0
    loop: start=0, step=1, limit=4
    $region2: #{tpu_custom_call.1} parent=1 // loop_pre_header
      _
    $region3: #{tpu_custom_call.1} parent=1 // loop_header
      %s21 = sphi 0, %s25
      %p22 = scmp.ge.s32.totalorder %s21, 4
      %s31 = sphi 0, %s33
      %s34 = sphi 0, %s31
      %s35 = sphi 0, %s34
      %s51 = sphi 0, %s35
      %s55 = sphi 0, %s55
      %s57 = sphi 0, %s55
      %s58 = sphi 0, %s57
      %s72 = sphi 0, %s58
      %s76 = sphi 0, %s76
      %s78 = sphi 0, %s76
      %s79 = sphi 0, %s78
      %s93 = sphi 0, %s79
      %s97 = sphi 0, %s97
      %s99 = sphi 0, %s97
      %s100 = sphi 0, %s99
      %s114 = sphi 0, %s100
      %s118 = sphi 0, %s118
      %s120 = sphi 0, %s118
      %s121 = sphi 0, %s120
      %s135 = sphi 0, %s121
      %s139 = sphi 0, %s139
      %s141 = sphi 0, %s139
      %s142 = sphi 0, %s141
      %s156 = sphi 0, %s142
      %s160 = sphi 0, %s160
      %s162 = sphi 0, %s160
      %s163 = sphi 0, %s162
      %s177 = sphi 0, %s163
      %s183 = sphi 0, %s185
      %s186 = sphi 0, %s183
      %s187 = sphi 0, %s186
      %s203 = sphi 0, %s187
    $region4: #{tpu_custom_call.1} parent=1 // loop_header_branch
      %24 = sbr.rel (%p22) target = $region8
    $region5: #{tpu_custom_call.1} parent=1 // loop_body
      %s26 = ssub.s32 %s21, 1
      %s27 = ssub.s32 %s21, 2
      %s28 = sadd.s32 %s21, 1
      %s29 = ssub.s32 %s21, %s28
      %p30 = scmp.eq.s32.totalorder %s29, 0
      %s32 = sadd.s32 %s31, 1
      %s33 = scalar_select %p30, %s31, %s32
      %p36 = pneg %p30
      %p37 = scmp.eq.s32.totalorder %s21, 1
      %p38 = por %p36, %p37
      %p39 = scmp.ne.s32.totalorder %s31, %s34
      %p40 = scmp.eq.s32.totalorder %s21, 0
      %p41 = por %p39, %p40
      %p42 = scmp.ne.s32.totalorder %s31, %s34
      %p43 = scmp.eq.s32.totalorder %s26, 1
      %p44 = por %p42, %p43
      %p45 = scmp.ne.s32.totalorder %s34, %s35
      %p46 = scmp.eq.s32.totalorder %s26, 0
      %p47 = por %p45, %p46
      %p48 = scmp.ne.s32.totalorder %s34, %s35
      %p49 = scmp.eq.s32.totalorder %s27, 1
      %p50 = por %p48, %p49
      %p52 = scmp.ne.s32.totalorder %s35, %s51
      %p53 = scmp.eq.s32.totalorder %s27, 0
      %p54 = por %p52, %p53
      %s56 = sadd.s32 %s55, 1
      %p59 = scmp.eq.s32.totalorder %s21, 1
      %p60 = scmp.ne.s32.totalorder %s55, %s57
      %p61 = scmp.eq.s32.totalorder %s21, 0
      %p62 = por %p60, %p61
      %p63 = scmp.ne.s32.totalorder %s55, %s57
      %p64 = scmp.eq.s32.totalorder %s26, 1
      %p65 = por %p63, %p64
      %p66 = scmp.ne.s32.totalorder %s57, %s58
      %p67 = scmp.eq.s32.totalorder %s26, 0
      %p68 = por %p66, %p67
      %p69 = scmp.ne.s32.totalorder %s57, %s58
      %p70 = scmp.eq.s32.totalorder %s27, 1
      %p71 = por %p69, %p70
      %p73 = scmp.ne.s32.totalorder %s58, %s72
      %p74 = scmp.eq.s32.totalorder %s27, 0
      %p75 = por %p73, %p74
      %s77 = sadd.s32 %s76, 1
      %p80 = scmp.eq.s32.totalorder %s21, 1
      %p81 = scmp.ne.s32.totalorder %s76, %s78
      %p82 = scmp.eq.s32.totalorder %s21, 0
      %p83 = por %p81, %p82
      %p84 = scmp.ne.s32.totalorder %s76, %s78
      %p85 = scmp.eq.s32.totalorder %s26, 1
      %p86 = por %p84, %p85
      %p87 = scmp.ne.s32.totalorder %s78, %s79
      %p88 = scmp.eq.s32.totalorder %s26, 0
      %p89 = por %p87, %p88
      %p90 = scmp.ne.s32.totalorder %s78, %s79
      %p91 = scmp.eq.s32.totalorder %s27, 1
      %p92 = por %p90, %p91
      %p94 = scmp.ne.s32.totalorder %s79, %s93
      %p95 = scmp.eq.s32.totalorder %s27, 0
      %p96 = por %p94, %p95
      %s98 = sadd.s32 %s97, 1
      %p101 = scmp.eq.s32.totalorder %s21, 1
      %p102 = scmp.ne.s32.totalorder %s97, %s99
      %p103 = scmp.eq.s32.totalorder %s21, 0
      %p104 = por %p102, %p103
      %p105 = scmp.ne.s32.totalorder %s97, %s99
      %p106 = scmp.eq.s32.totalorder %s26, 1
      %p107 = por %p105, %p106
      %p108 = scmp.ne.s32.totalorder %s99, %s100
      %p109 = scmp.eq.s32.totalorder %s26, 0
      %p110 = por %p108, %p109
      %p111 = scmp.ne.s32.totalorder %s99, %s100
      %p112 = scmp.eq.s32.totalorder %s27, 1
      %p113 = por %p111, %p112
      %p115 = scmp.ne.s32.totalorder %s100, %s114
      %p116 = scmp.eq.s32.totalorder %s27, 0
      %p117 = por %p115, %p116
      %s119 = sadd.s32 %s118, 1
      %p122 = scmp.eq.s32.totalorder %s21, 1
      %p123 = scmp.ne.s32.totalorder %s118, %s120
      %p124 = scmp.eq.s32.totalorder %s21, 0
      %p125 = por %p123, %p124
      %p126 = scmp.ne.s32.totalorder %s118, %s120
      %p127 = scmp.eq.s32.totalorder %s26, 1
      %p128 = por %p126, %p127
      %p129 = scmp.ne.s32.totalorder %s120, %s121
      %p130 = scmp.eq.s32.totalorder %s26, 0
      %p131 = por %p129, %p130
      %p132 = scmp.ne.s32.totalorder %s120, %s121
      %p133 = scmp.eq.s32.totalorder %s27, 1
      %p134 = por %p132, %p133
      %p136 = scmp.ne.s32.totalorder %s121, %s135
      %p137 = scmp.eq.s32.totalorder %s27, 0
      %p138 = por %p136, %p137
      %s140 = sadd.s32 %s139, 1
      %p143 = scmp.eq.s32.totalorder %s21, 1
      %p144 = scmp.ne.s32.totalorder %s139, %s141
      %p145 = scmp.eq.s32.totalorder %s21, 0
      %p146 = por %p144, %p145
      %p147 = scmp.ne.s32.totalorder %s139, %s141
      %p148 = scmp.eq.s32.totalorder %s26, 1
      %p149 = por %p147, %p148
      %p150 = scmp.ne.s32.totalorder %s141, %s142
      %p151 = scmp.eq.s32.totalorder %s26, 0
      %p152 = por %p150, %p151
      %p153 = scmp.ne.s32.totalorder %s141, %s142
      %p154 = scmp.eq.s32.totalorder %s27, 1
      %p155 = por %p153, %p154
      %p157 = scmp.ne.s32.totalorder %s142, %s156
      %p158 = scmp.eq.s32.totalorder %s27, 0
      %p159 = por %p157, %p158
      %s161 = sadd.s32 %s160, 1
      %p164 = scmp.eq.s32.totalorder %s21, 1
      %p165 = scmp.ne.s32.totalorder %s160, %s162
      %p166 = scmp.eq.s32.totalorder %s21, 0
      %p167 = por %p165, %p166
      %p168 = scmp.ne.s32.totalorder %s160, %s162
      %p169 = scmp.eq.s32.totalorder %s26, 1
      %p170 = por %p168, %p169
      %p171 = scmp.ne.s32.totalorder %s162, %s163
      %p172 = scmp.eq.s32.totalorder %s26, 0
      %p173 = por %p171, %p172
      %p174 = scmp.ne.s32.totalorder %s162, %s163
      %p175 = scmp.eq.s32.totalorder %s27, 1
      %p176 = por %p174, %p175
      %p178 = scmp.ne.s32.totalorder %s163, %s177
      %p179 = scmp.eq.s32.totalorder %s27, 0
      %p180 = por %p178, %p179
      %s181 = ssub.s32 %s21, %s28
      %p182 = scmp.eq.s32.totalorder %s181, 0
      %s184 = sadd.s32 %s183, 1
      %s185 = scalar_select %p182, %s183, %s184
      %p188 = pneg %p182
      %p189 = scmp.eq.s32.totalorder %s21, 1
      %p190 = por %p188, %p189
      %p191 = scmp.ne.s32.totalorder %s183, %s186
      %p192 = scmp.eq.s32.totalorder %s21, 0
      %p193 = por %p191, %p192
      %p194 = scmp.ne.s32.totalorder %s183, %s186
      %p195 = scmp.eq.s32.totalorder %s26, 1
      %p196 = por %p194, %p195
      %p197 = scmp.ne.s32.totalorder %s186, %s187
      %p198 = scmp.eq.s32.totalorder %s26, 0
      %p199 = por %p197, %p198
      %p200 = scmp.ne.s32.totalorder %s186, %s187
      %p201 = scmp.eq.s32.totalorder %s27, 1
      %p202 = por %p200, %p201
      %p204 = scmp.ne.s32.totalorder %s187, %s203
      %p205 = scmp.eq.s32.totalorder %s27, 0
      %p206 = por %p204, %p205
      %p207 = scmp.le.s32.totalorder 1, %s21
      %p208 = scmp.lt.s32.totalorder %s21, 3
      %p209 = pnand %p207, %p208
      %p210 = pneg %p209
      // Predicated region
      $region9: #{tpu_custom_call.1} parent=5 // pred_check
        _
      $region10: #{tpu_custom_call.1} parent=5 // pred_check_branch
        %212 = sbr.rel (%p209) target = $region12
      $region11: #{tpu_custom_call.1} parent=5 // pred_region
        %s213 = ssub.s32 %s21, 1
        // Predicated region
        $region13: #{tpu_custom_call.1} parent=11 // pred_check
          %p214 = pneg %p68
        $region14: #{tpu_custom_call.1} parent=11 // pred_check_branch
          %216 = sbr.rel (%p214) target = $region16
        $region15: #{tpu_custom_call.1} parent=11 // pred_region
          %s218 = ssub.s32 3072, 3072
          %219 = vsyncadd [#allocation6], %s218
          %s220 = sshll.u32 [#allocation5], 4
          %s221 = int_to_ptr.vmem [resolvable:$true] %s220
          %226 = dma.hbm_to_vmem [thread:$0]  %s1, 3072, %s221, [#allocation6], 64, 64, 4
        $region16: #{tpu_custom_call.1} parent=11 // pred_fallthru
          _
        // Predicated region
        $region17: #{tpu_custom_call.1} parent=11 // pred_check
          %p227 = pneg %p89
        $region18: #{tpu_custom_call.1} parent=11 // pred_check_branch
          %229 = sbr.rel (%p227) target = $region20
        $region19: #{tpu_custom_call.1} parent=11 // pred_region
          _
        $region20: #{tpu_custom_call.1} parent=11 // pred_fallthru
          _
        // Predicated region
        $region21: #{tpu_custom_call.1} parent=11 // pred_check
          %p230 = pneg %p110
        $region22: #{tpu_custom_call.1} parent=11 // pred_check_branch
          %232 = sbr.rel (%p230) target = $region24
        $region23: #{tpu_custom_call.1} parent=11 // pred_region
          %s234 = ssub.s32 3072, 3072
          %235 = vsyncadd [#allocation6], %s234
          %s236 = sshll.u32 [#allocation7], 4
          %s237 = int_to_ptr.vmem [resolvable:$true] %s236
          %242 = dma.hbm_to_vmem [thread:$0]  %s3, 3072, %s237, [#allocation6], 64, 64, 4
        $region24: #{tpu_custom_call.1} parent=11 // pred_fallthru
          _
        // Predicated region
        $region25: #{tpu_custom_call.1} parent=11 // pred_check
          %p243 = pneg %p131
        $region26: #{tpu_custom_call.1} parent=11 // pred_check_branch
          %245 = sbr.rel (%p243) target = $region28
        $region27: #{tpu_custom_call.1} parent=11 // pred_region
          _
        $region28: #{tpu_custom_call.1} parent=11 // pred_fallthru
          _
        // Predicated region
        $region29: #{tpu_custom_call.1} parent=11 // pred_check
          %p246 = pneg %p152
        $region30: #{tpu_custom_call.1} parent=11 // pred_check_branch
          %248 = sbr.rel (%p246) target = $region32
        $region31: #{tpu_custom_call.1} parent=11 // pred_region
          %s250 = ssub.s32 1024, 1024
          %251 = vsyncadd [#allocation9], %s250
          %s252 = sshll.u32 [#allocation8], 4
          %s253 = int_to_ptr.vmem [resolvable:$true] %s252
          %258 = dma.hbm_to_vmem [thread:$0]  %s5, 1024, %s253, [#allocation9], 64, 64, 4
        $region32: #{tpu_custom_call.1} parent=11 // pred_fallthru
          _
        // Predicated region
        $region33: #{tpu_custom_call.1} parent=11 // pred_check
          %p259 = pneg %p173
        $region34: #{tpu_custom_call.1} parent=11 // pred_check_branch
          %261 = sbr.rel (%p259) target = $region36
        $region35: #{tpu_custom_call.1} parent=11 // pred_region
          _
        $region36: #{tpu_custom_call.1} parent=11 // pred_fallthru
          _
      $region12: #{tpu_custom_call.1} parent=5 // pred_fallthru
        _
      %p262 = scmp.lt.s32.totalorder %s21, 2
      // Predicated region
      $region37: #{tpu_custom_call.1} parent=5 // pred_check
        %p263 = pneg %p262
      $region38: #{tpu_custom_call.1} parent=5 // pred_check_branch
        %265 = sbr.rel (%p263) target = $region40
      $region39: #{tpu_custom_call.1} parent=5 // pred_region
        // Predicated region
        $region41: #{tpu_custom_call.1} parent=39 // pred_check
          %p266 = pneg %p41
        $region42: #{tpu_custom_call.1} parent=39 // pred_check_branch
          %268 = sbr.rel (%p266) target = $region44
        $region43: #{tpu_custom_call.1} parent=39 // pred_region
          %s269 = sand.u32 %s31, 1
          %s270 = scalar_lea.sflag [#allocation3], %s269
          %s271 = sand.u32 %s31, 1
          %s272 = smul.addr %s271, 8
          %s273 = scalar_lea.vmem [#allocation2], %s272
          %s275 = ssub.s32 128, 128
          %276 = vsyncadd %s270, %s275
          %s277 = smul.addr %s21, 2
          %s278 = smul.addr %s277, 64
          %s279 = scalar_lea.hbm %s0, %s278
          %s280 = sshll.u32 %s273, 4
          %s281 = int_to_ptr.vmem [resolvable:$true] %s280
          %286 = dma.hbm_to_vmem [thread:$0]  %s279, 128, %s281, %s270, 64, 64, 4
        $region44: #{tpu_custom_call.1} parent=39 // pred_fallthru
          _
      $region40: #{tpu_custom_call.1} parent=5 // pred_fallthru
        _
      %p287 = scmp.le.s32.totalorder 1, %s21
      %p288 = scmp.lt.s32.totalorder %s21, 3
      %p289 = pnand %p287, %p288
      %p290 = pneg %p289
      // Predicated region
      $region45: #{tpu_custom_call.1} parent=5 // pred_check
        _
      $region46: #{tpu_custom_call.1} parent=5 // pred_check_branch
        %292 = sbr.rel (%p289) target = $region48
      $region47: #{tpu_custom_call.1} parent=5 // pred_region
        %s293 = ssub.s32 %s21, 1
        %s294 = sand.u32 %s34, 1
        %s295 = scalar_lea.sflag [#allocation3], %s294
        %s296 = sand.u32 %s34, 1
        %s297 = smul.addr %s296, 8
        %s298 = scalar_lea.vmem [#allocation2], %s297
        // Predicated region
        $region49: #{tpu_custom_call.1} parent=47 // pred_check
          %p299 = pneg %p47
        $region50: #{tpu_custom_call.1} parent=47 // pred_check_branch
          %301 = sbr.rel (%p299) target = $region52
        $region51: #{tpu_custom_call.1} parent=47 // pred_region
          %302 = dma.done %s295, 128
        $region52: #{tpu_custom_call.1} parent=47 // pred_fallthru
          _
        // Predicated region
        $region53: #{tpu_custom_call.1} parent=47 // pred_check
          %p303 = pneg %p68
        $region54: #{tpu_custom_call.1} parent=47 // pred_check_branch
          %305 = sbr.rel (%p303) target = $region56
        $region55: #{tpu_custom_call.1} parent=47 // pred_region
          %306 = dma.done [#allocation6], 3072
        $region56: #{tpu_custom_call.1} parent=47 // pred_fallthru
          _
        // Predicated region
        $region57: #{tpu_custom_call.1} parent=47 // pred_check
          %p307 = pneg %p110
        $region58: #{tpu_custom_call.1} parent=47 // pred_check_branch
          %309 = sbr.rel (%p307) target = $region60
        $region59: #{tpu_custom_call.1} parent=47 // pred_region
          %310 = dma.done [#allocation6], 3072
        $region60: #{tpu_custom_call.1} parent=47 // pred_fallthru
          _
        // Predicated region
        $region61: #{tpu_custom_call.1} parent=47 // pred_check
          %p311 = pneg %p152
        $region62: #{tpu_custom_call.1} parent=47 // pred_check_branch
          %313 = sbr.rel (%p311) target = $region64
        $region63: #{tpu_custom_call.1} parent=47 // pred_region
          %314 = dma.done [#allocation9], 1024
        $region64: #{tpu_custom_call.1} parent=47 // pred_fallthru
          _
        %s315 = sand.u32 %s34, 1
        %s316 = scalar_lea.sflag [#allocation3], %s315
        %s317 = sand.u32 %s34, 1
        %s318 = smul.addr %s317, 8
        %s319 = scalar_lea.vmem [#allocation2], %s318
        %p320 = pneg %p47
        %p321 = pneg %p44
        %p322 = pneg %p68
        %p323 = pneg %p65
        %p324 = pneg %p89
        %p325 = pneg %p86
        %p326 = pneg %p110
        %p327 = pneg %p107
        %p328 = pneg %p131
        %p329 = pneg %p128
        %p330 = pneg %p152
        %p331 = pneg %p149
        %p332 = pneg %p173
        %p333 = pneg %p170
        %p334 = pneg %p199
        %p335 = pneg %p196
        %s336 = sand.u32 %s186, 1
        %s337 = scalar_lea.sflag [#allocation4], %s336
        %s338 = sand.u32 %s186, 1
        %s339 = smul.addr %s338, 16
        %s340 = scalar_lea.vmem [#allocation10], %s339
        %v342 = vld [vmem:[%s298] sm:$0xf]
        %v343 = vld [vmem:[%s298 + $0x4] sm:$0xf]
        %v346 = vunpack.c.l.b16 %v342
        %v347 = vunpack.c.l.b16 %v343
        %v348 = vpack.c.b16 %v347, %v346
        %v349 = vrot.slane %v348, 6
        %vm350 = vcmask 1041408
        %v353 = vsel %vm350, 0, %v349
        %v355 = vrot.slane %v348, 7
        %vm356 = vcmask 1040384
        %v358 = vsel %vm356, 0, %v355
        %v361 = vld [vmem:[#allocation5] sm:$0xf]
        %v362 = vld [vmem:[#allocation5 + $0x4] sm:$0xf]
        %v363 = vld [vmem:[#allocation5 + $0x8] sm:$0xf]
        %v364 = vld [vmem:[#allocation5 + $0xc] sm:$0xf]
        %v365 = vld [vmem:[#allocation5 + $0x10] sm:$0xf]
        %v366 = vld [vmem:[#allocation5 + $0x14] sm:$0xf]
        %v367 = vld [vmem:[#allocation5 + $0x18] sm:$0xf]
        %v368 = vld [vmem:[#allocation5 + $0x1c] sm:$0xf]
        %v369 = vld [vmem:[#allocation5 + $0x20] sm:$0xf]
        %v370 = vld [vmem:[#allocation5 + $0x24] sm:$0xf]
        %v371 = vld [vmem:[#allocation5 + $0x28] sm:$0xf]
        %v372 = vld [vmem:[#allocation5 + $0x2c] sm:$0xf]
        %v373 = vld [vmem:[#allocation5 + $0x30] sm:$0xf]
        %v374 = vld [vmem:[#allocation5 + $0x34] sm:$0xf]
        %v375 = vld [vmem:[#allocation5 + $0x38] sm:$0xf]
        %v376 = vld [vmem:[#allocation5 + $0x3c] sm:$0xf]
        %v377 = vld [vmem:[#allocation5 + $0x40] sm:$0xf]
        %v378 = vld [vmem:[#allocation5 + $0x44] sm:$0xf]
        %v379 = vld [vmem:[#allocation5 + $0x48] sm:$0xf]
        %v380 = vld [vmem:[#allocation5 + $0x4c] sm:$0xf]
        %v381 = vld [vmem:[#allocation5 + $0x50] sm:$0xf]
        %v382 = vld [vmem:[#allocation5 + $0x54] sm:$0xf]
        %v383 = vld [vmem:[#allocation5 + $0x58] sm:$0xf]
        %v384 = vld [vmem:[#allocation5 + $0x5c] sm:$0xf]
        %v385 = vld [vmem:[#allocation5 + $0x60] sm:$0xf]
        %v386 = vld [vmem:[#allocation5 + $0x64] sm:$0xf]
        %v387 = vld [vmem:[#allocation5 + $0x68] sm:$0xf]
        %v388 = vld [vmem:[#allocation5 + $0x6c] sm:$0xf]
        %v389 = vld [vmem:[#allocation5 + $0x70] sm:$0xf]
        %v390 = vld [vmem:[#allocation5 + $0x74] sm:$0xf]
        %v391 = vld [vmem:[#allocation5 + $0x78] sm:$0xf]
        %v392 = vld [vmem:[#allocation5 + $0x7c] sm:$0xf]
        %v393 = vld [vmem:[#allocation5 + $0x80] sm:$0xf]
        %v394 = vld [vmem:[#allocation5 + $0x84] sm:$0xf]
        %v395 = vld [vmem:[#allocation5 + $0x88] sm:$0xf]
        %v396 = vld [vmem:[#allocation5 + $0x8c] sm:$0xf]
        %v397 = vld [vmem:[#allocation5 + $0x90] sm:$0xf]
        %v398 = vld [vmem:[#allocation5 + $0x94] sm:$0xf]
        %v399 = vld [vmem:[#allocation5 + $0x98] sm:$0xf]
        %v400 = vld [vmem:[#allocation5 + $0x9c] sm:$0xf]
        %v401 = vld [vmem:[#allocation5 + $0xa0] sm:$0xf]
        %v402 = vld [vmem:[#allocation5 + $0xa4] sm:$0xf]
        %v403 = vld [vmem:[#allocation5 + $0xa8] sm:$0xf]
        %v404 = vld [vmem:[#allocation5 + $0xac] sm:$0xf]
        %v405 = vld [vmem:[#allocation5 + $0xb0] sm:$0xf]
        %v406 = vld [vmem:[#allocation5 + $0xb4] sm:$0xf]
        %v407 = vld [vmem:[#allocation5 + $0xb8] sm:$0xf]
        %v408 = vld [vmem:[#allocation5 + $0xbc] sm:$0xf]
        %v409 = vld [vmem:[%s2] sm:$0x1]
        %v411 = vlaneseq
        %v412 = vshrl.u32 %v411, 7
        %v413 = vsub.s32 0, %v412
        %v414 = vrot.slane %v409, %v413
        %v464 = vunpack.c.l.b16 %v361
        %v465 = vunpack.c.l.b16 %v362
        %v466 = vunpack.c.l.b16 %v363
        %v467 = vunpack.c.l.b16 %v364
        %v468 = vunpack.c.l.b16 %v365
        %v469 = vunpack.c.l.b16 %v366
        %v470 = vunpack.c.l.b16 %v367
        %v471 = vunpack.c.l.b16 %v368
        %v472 = vunpack.c.l.b16 %v369
        %v473 = vunpack.c.l.b16 %v370
        %v474 = vunpack.c.l.b16 %v371
        %v475 = vunpack.c.l.b16 %v372
        %v476 = vunpack.c.l.b16 %v373
        %v477 = vunpack.c.l.b16 %v374
        %v478 = vunpack.c.l.b16 %v375
        %v479 = vunpack.c.l.b16 %v376
        %v480 = vunpack.c.l.b16 %v377
        %v481 = vunpack.c.l.b16 %v378
        %v482 = vunpack.c.l.b16 %v379
        %v483 = vunpack.c.l.b16 %v380
        %v484 = vunpack.c.l.b16 %v381
        %v485 = vunpack.c.l.b16 %v382
        %v486 = vunpack.c.l.b16 %v383
        %v487 = vunpack.c.l.b16 %v384
        %v488 = vunpack.c.l.b16 %v385
        %v489 = vunpack.c.l.b16 %v386
        %v490 = vunpack.c.l.b16 %v387
        %v491 = vunpack.c.l.b16 %v388
        %v492 = vunpack.c.l.b16 %v389
        %v493 = vunpack.c.l.b16 %v390
        %v494 = vunpack.c.l.b16 %v391
        %v495 = vunpack.c.l.b16 %v392
        %v496 = vunpack.c.l.b16 %v393
        %v497 = vunpack.c.l.b16 %v394
        %v498 = vunpack.c.l.b16 %v395
        %v499 = vunpack.c.l.b16 %v396
        %v500 = vunpack.c.l.b16 %v397
        %v501 = vunpack.c.l.b16 %v398
        %v502 = vunpack.c.l.b16 %v399
        %v503 = vunpack.c.l.b16 %v400
        %v504 = vunpack.c.l.b16 %v401
        %v505 = vunpack.c.l.b16 %v402
        %v506 = vunpack.c.l.b16 %v403
        %v507 = vunpack.c.l.b16 %v404
        %v508 = vunpack.c.l.b16 %v405
        %v509 = vunpack.c.l.b16 %v406
        %v510 = vunpack.c.l.b16 %v407
        %v511 = vunpack.c.l.b16 %v408
        %v512 = vpack.c.b16 %v465, %v464
        %v513 = vpack.c.b16 %v467, %v466
        %v514 = vpack.c.b16 %v469, %v468
        %v515 = vpack.c.b16 %v471, %v470
        %v516 = vpack.c.b16 %v473, %v472
        %v517 = vpack.c.b16 %v475, %v474
        %v518 = vpack.c.b16 %v477, %v476
        %v519 = vpack.c.b16 %v479, %v478
        %v520 = vpack.c.b16 %v481, %v480
        %v521 = vpack.c.b16 %v483, %v482
        %v522 = vpack.c.b16 %v485, %v484
        %v523 = vpack.c.b16 %v487, %v486
        %v524 = vpack.c.b16 %v489, %v488
        %v525 = vpack.c.b16 %v491, %v490
        %v526 = vpack.c.b16 %v493, %v492
        %v527 = vpack.c.b16 %v495, %v494
        %v528 = vpack.c.b16 %v497, %v496
        %v529 = vpack.c.b16 %v499, %v498
        %v530 = vpack.c.b16 %v501, %v500
        %v531 = vpack.c.b16 %v503, %v502
        %v532 = vpack.c.b16 %v505, %v504
        %v533 = vpack.c.b16 %v507, %v506
        %v534 = vpack.c.b16 %v509, %v508
        %v535 = vpack.c.b16 %v511, %v510
        %560 = vmatprep.subr.bf16.mxu0 0
        %561 = vmatpush1.bf16.msra.mxu0 %v519
        %562 = vmatprep.subr.bf16.mxu0 0
        %563 = vmatpush1.bf16.msra.mxu0 %v518
        %564 = vmatprep.subr.bf16.mxu0 0
        %565 = vmatpush1.bf16.msra.mxu0 %v517
        %566 = vmatprep.subr.bf16.mxu0 0
        %567 = vmatpush1.bf16.msra.mxu0 %v516
        %568 = vmatprep.subr.bf16.mxu0 0
        %569 = vmatpush1.bf16.msra.mxu0 %v515
        %570 = vmatprep.subr.bf16.mxu0 0
        %571 = vmatpush1.bf16.msra.mxu0 %v514
        %572 = vmatprep.subr.bf16.mxu0 0
        %573 = vmatpush1.bf16.msra.mxu0 %v513
        %574 = vmatprep.subr.bf16.mxu0 0
        %575 = vmatpush1.bf16.msra.mxu0 %v512
        %576 = vmatprep.subr.bf16.mxu0 0
        %577 = vmatpush2.bf16.msra.mxu0 %v527
        %578 = vmatprep.subr.bf16.mxu0 0
        %579 = vmatpush2.bf16.msra.mxu0 %v526
        %580 = vmatprep.subr.bf16.mxu0 0
        %581 = vmatpush2.bf16.msra.mxu0 %v525
        %582 = vmatprep.subr.bf16.mxu0 0
        %583 = vmatpush2.bf16.msra.mxu0 %v524
        %584 = vmatprep.subr.bf16.mxu0 0
        %585 = vmatpush2.bf16.msra.mxu0 %v523
        %586 = vmatprep.subr.bf16.mxu0 0
        %587 = vmatpush2.bf16.msra.mxu0 %v522
        %588 = vmatprep.subr.bf16.mxu0 0
        %589 = vmatpush2.bf16.msra.mxu0 %v521
        %590 = vmatprep.subr.bf16.mxu0 0
        %591 = vmatpush2.bf16.msra.mxu0 %v520
        %592 = vmatprep.mubr.bf16.mxu0 %v358
        %593 = vmatmul.mubr.bf16.gmra.mxu0 %v353
        %v594 = vpop.f32.mrf.mxu0
        %v595 = vadd.f32 %v414, %v594
        %v596 = vpop.f32.mrf.mxu0
        %v597 = vpop.f32.mrf.mxu0
        %v598 = vadd.f32 %v414, %v597
        %v599 = vpop.f32.mrf.mxu0
        %600 = vdwg.mxu0
        %601 = vmatprep.subr.bf16.mxu0 0
        %602 = vmatpush1.bf16.msra.mxu0 %v535
        %603 = vmatprep.subr.bf16.mxu0 0
        %604 = vmatpush1.bf16.msra.mxu0 %v534
        %605 = vmatprep.subr.bf16.mxu0 0
        %606 = vmatpush1.bf16.msra.mxu0 %v533
        %607 = vmatprep.subr.bf16.mxu0 0
        %608 = vmatpush1.bf16.msra.mxu0 %v532
        %609 = vmatprep.subr.bf16.mxu0 0
        %610 = vmatpush1.bf16.msra.mxu0 %v531
        %611 = vmatprep.subr.bf16.mxu0 0
        %612 = vmatpush1.bf16.msra.mxu0 %v530
        %613 = vmatprep.subr.bf16.mxu0 0
        %614 = vmatpush1.bf16.msra.mxu0 %v529
        %615 = vmatprep.subr.bf16.mxu0 0
        %616 = vmatpush1.bf16.msra.mxu0 %v528
        %617 = vmatprep.subr.bf16.mxu0 0
        %618 = vmatpush2.bf16.msra.mxu0 0
        %619 = vmatprep.subr.bf16.mxu0 0
        %620 = vmatpush2.bf16.msra.mxu0 0
        %621 = vmatprep.subr.bf16.mxu0 0
        %622 = vmatpush2.bf16.msra.mxu0 0
        %623 = vmatprep.subr.bf16.mxu0 0
        %624 = vmatpush2.bf16.msra.mxu0 0
        %625 = vmatprep.subr.bf16.mxu0 0
        %626 = vmatpush2.bf16.msra.mxu0 0
        %627 = vmatprep.subr.bf16.mxu0 0
        %628 = vmatpush2.bf16.msra.mxu0 0
        %629 = vmatprep.subr.bf16.mxu0 0
        %630 = vmatpush2.bf16.msra.mxu0 0
        %631 = vmatprep.subr.bf16.mxu0 0
        %632 = vmatpush2.bf16.msra.mxu0 0
        %633 = vmatprep.mubr.bf16.mxu0 0
        %634 = vmatmul.mubr.bf16.gmra.mxu0 %v348
        %v635 = vpop.f32.mrf.mxu0
        %v636 = vadd.f32 %v595, %v635
        %v637 = vpop.f32.mrf.mxu0
        %v638 = vpop.f32.mrf.mxu0
        %v639 = vadd.f32 %v598, %v638
        %v640 = vpop.f32.mrf.mxu0
        %641 = vdwg.mxu0
        %v642 = vmax.f32 %v636, 0.0
        %v643 = vmax.f32 %v639, 0.0
        %v644 = vpack.c.bf16 %v643, %v642
        %v646 = vrot.slane %v644, 6
        %v648 = vsel %vm350, 0, %v646
        %v650 = vrot.slane %v644, 7
        %v652 = vsel %vm356, 0, %v650
        %v654 = vld [vmem:[#allocation7] sm:$0xf]
        %v655 = vld [vmem:[#allocation7 + $0x4] sm:$0xf]
        %v656 = vld [vmem:[#allocation7 + $0x8] sm:$0xf]
        %v657 = vld [vmem:[#allocation7 + $0xc] sm:$0xf]
        %v658 = vld [vmem:[#allocation7 + $0x10] sm:$0xf]
        %v659 = vld [vmem:[#allocation7 + $0x14] sm:$0xf]
        %v660 = vld [vmem:[#allocation7 + $0x18] sm:$0xf]
        %v661 = vld [vmem:[#allocation7 + $0x1c] sm:$0xf]
        %v662 = vld [vmem:[#allocation7 + $0x20] sm:$0xf]
        %v663 = vld [vmem:[#allocation7 + $0x24] sm:$0xf]
        %v664 = vld [vmem:[#allocation7 + $0x28] sm:$0xf]
        %v665 = vld [vmem:[#allocation7 + $0x2c] sm:$0xf]
        %v666 = vld [vmem:[#allocation7 + $0x30] sm:$0xf]
        %v667 = vld [vmem:[#allocation7 + $0x34] sm:$0xf]
        %v668 = vld [vmem:[#allocation7 + $0x38] sm:$0xf]
        %v669 = vld [vmem:[#allocation7 + $0x3c] sm:$0xf]
        %v670 = vld [vmem:[#allocation7 + $0x40] sm:$0xf]
        %v671 = vld [vmem:[#allocation7 + $0x44] sm:$0xf]
        %v672 = vld [vmem:[#allocation7 + $0x48] sm:$0xf]
        %v673 = vld [vmem:[#allocation7 + $0x4c] sm:$0xf]
        %v674 = vld [vmem:[#allocation7 + $0x50] sm:$0xf]
        %v675 = vld [vmem:[#allocation7 + $0x54] sm:$0xf]
        %v676 = vld [vmem:[#allocation7 + $0x58] sm:$0xf]
        %v677 = vld [vmem:[#allocation7 + $0x5c] sm:$0xf]
        %v678 = vld [vmem:[#allocation7 + $0x60] sm:$0xf]
        %v679 = vld [vmem:[#allocation7 + $0x64] sm:$0xf]
        %v680 = vld [vmem:[#allocation7 + $0x68] sm:$0xf]
        %v681 = vld [vmem:[#allocation7 + $0x6c] sm:$0xf]
        %v682 = vld [vmem:[#allocation7 + $0x70] sm:$0xf]
        %v683 = vld [vmem:[#allocation7 + $0x74] sm:$0xf]
        %v684 = vld [vmem:[#allocation7 + $0x78] sm:$0xf]
        %v685 = vld [vmem:[#allocation7 + $0x7c] sm:$0xf]
        %v686 = vld [vmem:[#allocation7 + $0x80] sm:$0xf]
        %v687 = vld [vmem:[#allocation7 + $0x84] sm:$0xf]
        %v688 = vld [vmem:[#allocation7 + $0x88] sm:$0xf]
        %v689 = vld [vmem:[#allocation7 + $0x8c] sm:$0xf]
        %v690 = vld [vmem:[#allocation7 + $0x90] sm:$0xf]
        %v691 = vld [vmem:[#allocation7 + $0x94] sm:$0xf]
        %v692 = vld [vmem:[#allocation7 + $0x98] sm:$0xf]
        %v693 = vld [vmem:[#allocation7 + $0x9c] sm:$0xf]
        %v694 = vld [vmem:[#allocation7 + $0xa0] sm:$0xf]
        %v695 = vld [vmem:[#allocation7 + $0xa4] sm:$0xf]
        %v696 = vld [vmem:[#allocation7 + $0xa8] sm:$0xf]
        %v697 = vld [vmem:[#allocation7 + $0xac] sm:$0xf]
        %v698 = vld [vmem:[#allocation7 + $0xb0] sm:$0xf]
        %v699 = vld [vmem:[#allocation7 + $0xb4] sm:$0xf]
        %v700 = vld [vmem:[#allocation7 + $0xb8] sm:$0xf]
        %v701 = vld [vmem:[#allocation7 + $0xbc] sm:$0xf]
        %v702 = vld [vmem:[%s4] sm:$0x1]
        %v704 = vlaneseq
        %v705 = vshrl.u32 %v704, 7
        %v706 = vsub.s32 0, %v705
        %v707 = vrot.slane %v702, %v706
        %v757 = vunpack.c.l.b16 %v654
        %v758 = vunpack.c.l.b16 %v655
        %v759 = vunpack.c.l.b16 %v656
        %v760 = vunpack.c.l.b16 %v657
        %v761 = vunpack.c.l.b16 %v658
        %v762 = vunpack.c.l.b16 %v659
        %v763 = vunpack.c.l.b16 %v660
        %v764 = vunpack.c.l.b16 %v661
        %v765 = vunpack.c.l.b16 %v662
        %v766 = vunpack.c.l.b16 %v663
        %v767 = vunpack.c.l.b16 %v664
        %v768 = vunpack.c.l.b16 %v665
        %v769 = vunpack.c.l.b16 %v666
        %v770 = vunpack.c.l.b16 %v667
        %v771 = vunpack.c.l.b16 %v668
        %v772 = vunpack.c.l.b16 %v669
        %v773 = vunpack.c.l.b16 %v670
        %v774 = vunpack.c.l.b16 %v671
        %v775 = vunpack.c.l.b16 %v672
        %v776 = vunpack.c.l.b16 %v673
        %v777 = vunpack.c.l.b16 %v674
        %v778 = vunpack.c.l.b16 %v675
        %v779 = vunpack.c.l.b16 %v676
        %v780 = vunpack.c.l.b16 %v677
        %v781 = vunpack.c.l.b16 %v678
        %v782 = vunpack.c.l.b16 %v679
        %v783 = vunpack.c.l.b16 %v680
        %v784 = vunpack.c.l.b16 %v681
        %v785 = vunpack.c.l.b16 %v682
        %v786 = vunpack.c.l.b16 %v683
        %v787 = vunpack.c.l.b16 %v684
        %v788 = vunpack.c.l.b16 %v685
        %v789 = vunpack.c.l.b16 %v686
        %v790 = vunpack.c.l.b16 %v687
        %v791 = vunpack.c.l.b16 %v688
        %v792 = vunpack.c.l.b16 %v689
        %v793 = vunpack.c.l.b16 %v690
        %v794 = vunpack.c.l.b16 %v691
        %v795 = vunpack.c.l.b16 %v692
        %v796 = vunpack.c.l.b16 %v693
        %v797 = vunpack.c.l.b16 %v694
        %v798 = vunpack.c.l.b16 %v695
        %v799 = vunpack.c.l.b16 %v696
        %v800 = vunpack.c.l.b16 %v697
        %v801 = vunpack.c.l.b16 %v698
        %v802 = vunpack.c.l.b16 %v699
        %v803 = vunpack.c.l.b16 %v700
        %v804 = vunpack.c.l.b16 %v701
        %v805 = vpack.c.b16 %v758, %v757
        %v806 = vpack.c.b16 %v760, %v759
        %v807 = vpack.c.b16 %v762, %v761
        %v808 = vpack.c.b16 %v764, %v763
        %v809 = vpack.c.b16 %v766, %v765
        %v810 = vpack.c.b16 %v768, %v767
        %v811 = vpack.c.b16 %v770, %v769
        %v812 = vpack.c.b16 %v772, %v771
        %v813 = vpack.c.b16 %v774, %v773
        %v814 = vpack.c.b16 %v776, %v775
        %v815 = vpack.c.b16 %v778, %v777
        %v816 = vpack.c.b16 %v780, %v779
        %v817 = vpack.c.b16 %v782, %v781
        %v818 = vpack.c.b16 %v784, %v783
        %v819 = vpack.c.b16 %v786, %v785
        %v820 = vpack.c.b16 %v788, %v787
        %v821 = vpack.c.b16 %v790, %v789
        %v822 = vpack.c.b16 %v792, %v791
        %v823 = vpack.c.b16 %v794, %v793
        %v824 = vpack.c.b16 %v796, %v795
        %v825 = vpack.c.b16 %v798, %v797
        %v826 = vpack.c.b16 %v800, %v799
        %v827 = vpack.c.b16 %v802, %v801
        %v828 = vpack.c.b16 %v804, %v803
        %853 = vmatprep.subr.bf16.mxu0 0
        %854 = vmatpush1.bf16.msra.mxu0 %v812
        %855 = vmatprep.subr.bf16.mxu0 0
        %856 = vmatpush1.bf16.msra.mxu0 %v811
        %857 = vmatprep.subr.bf16.mxu0 0
        %858 = vmatpush1.bf16.msra.mxu0 %v810
        %859 = vmatprep.subr.bf16.mxu0 0
        %860 = vmatpush1.bf16.msra.mxu0 %v809
        %861 = vmatprep.subr.bf16.mxu0 0
        %862 = vmatpush1.bf16.msra.mxu0 %v808
        %863 = vmatprep.subr.bf16.mxu0 0
        %864 = vmatpush1.bf16.msra.mxu0 %v807
        %865 = vmatprep.subr.bf16.mxu0 0
        %866 = vmatpush1.bf16.msra.mxu0 %v806
        %867 = vmatprep.subr.bf16.mxu0 0
        %868 = vmatpush1.bf16.msra.mxu0 %v805
        %869 = vmatprep.subr.bf16.mxu0 0
        %870 = vmatpush2.bf16.msra.mxu0 %v820
        %871 = vmatprep.subr.bf16.mxu0 0
        %872 = vmatpush2.bf16.msra.mxu0 %v819
        %873 = vmatprep.subr.bf16.mxu0 0
        %874 = vmatpush2.bf16.msra.mxu0 %v818
        %875 = vmatprep.subr.bf16.mxu0 0
        %876 = vmatpush2.bf16.msra.mxu0 %v817
        %877 = vmatprep.subr.bf16.mxu0 0
        %878 = vmatpush2.bf16.msra.mxu0 %v816
        %879 = vmatprep.subr.bf16.mxu0 0
        %880 = vmatpush2.bf16.msra.mxu0 %v815
        %881 = vmatprep.subr.bf16.mxu0 0
        %882 = vmatpush2.bf16.msra.mxu0 %v814
        %883 = vmatprep.subr.bf16.mxu0 0
        %884 = vmatpush2.bf16.msra.mxu0 %v813
        %885 = vmatprep.mubr.bf16.mxu0 %v652
        %886 = vmatmul.mubr.bf16.gmra.mxu0 %v648
        %v887 = vpop.f32.mrf.mxu0
        %v888 = vadd.f32 %v707, %v887
        %v889 = vpop.f32.mrf.mxu0
        %v890 = vpop.f32.mrf.mxu0
        %v891 = vadd.f32 %v707, %v890
        %v892 = vpop.f32.mrf.mxu0
        %893 = vdwg.mxu0
        %894 = vmatprep.subr.bf16.mxu0 0
        %895 = vmatpush1.bf16.msra.mxu0 %v828
        %896 = vmatprep.subr.bf16.mxu0 0
        %897 = vmatpush1.bf16.msra.mxu0 %v827
        %898 = vmatprep.subr.bf16.mxu0 0
        %899 = vmatpush1.bf16.msra.mxu0 %v826
        %900 = vmatprep.subr.bf16.mxu0 0
        %901 = vmatpush1.bf16.msra.mxu0 %v825
        %902 = vmatprep.subr.bf16.mxu0 0
        %903 = vmatpush1.bf16.msra.mxu0 %v824
        %904 = vmatprep.subr.bf16.mxu0 0
        %905 = vmatpush1.bf16.msra.mxu0 %v823
        %906 = vmatprep.subr.bf16.mxu0 0
        %907 = vmatpush1.bf16.msra.mxu0 %v822
        %908 = vmatprep.subr.bf16.mxu0 0
        %909 = vmatpush1.bf16.msra.mxu0 %v821
        %910 = vmatprep.subr.bf16.mxu0 0
        %911 = vmatpush2.bf16.msra.mxu0 0
        %912 = vmatprep.subr.bf16.mxu0 0
        %913 = vmatpush2.bf16.msra.mxu0 0
        %914 = vmatprep.subr.bf16.mxu0 0
        %915 = vmatpush2.bf16.msra.mxu0 0
        %916 = vmatprep.subr.bf16.mxu0 0
        %917 = vmatpush2.bf16.msra.mxu0 0
        %918 = vmatprep.subr.bf16.mxu0 0
        %919 = vmatpush2.bf16.msra.mxu0 0
        %920 = vmatprep.subr.bf16.mxu0 0
        %921 = vmatpush2.bf16.msra.mxu0 0
        %922 = vmatprep.subr.bf16.mxu0 0
        %923 = vmatpush2.bf16.msra.mxu0 0
        %924 = vmatprep.subr.bf16.mxu0 0
        %925 = vmatpush2.bf16.msra.mxu0 0
        %926 = vmatprep.mubr.bf16.mxu0 0
        %927 = vmatmul.mubr.bf16.gmra.mxu0 %v644
        %v928 = vpop.f32.mrf.mxu0
        %v929 = vadd.f32 %v888, %v928
        %v930 = vpop.f32.mrf.mxu0
        %v931 = vpop.f32.mrf.mxu0
        %v932 = vadd.f32 %v891, %v931
        %v933 = vpop.f32.mrf.mxu0
        %934 = vdwg.mxu0
        %v935 = vmax.f32 %v929, 0.0
        %v936 = vmax.f32 %v932, 0.0
        %v937 = vld [vmem:[#allocation8] sm:$0xf]
        %v938 = vld [vmem:[#allocation8 + $0x4] sm:$0xf]
        %v939 = vld [vmem:[#allocation8 + $0x8] sm:$0xf]
        %v940 = vld [vmem:[#allocation8 + $0xc] sm:$0xf]
        %v941 = vld [vmem:[#allocation8 + $0x10] sm:$0xf]
        %v942 = vld [vmem:[#allocation8 + $0x14] sm:$0xf]
        %v943 = vld [vmem:[#allocation8 + $0x18] sm:$0xf]
        %v944 = vld [vmem:[#allocation8 + $0x1c] sm:$0xf]
        %v945 = vld [vmem:[#allocation8 + $0x20] sm:$0xf]
        %v946 = vld [vmem:[#allocation8 + $0x24] sm:$0xf]
        %v947 = vld [vmem:[#allocation8 + $0x28] sm:$0xf]
        %v948 = vld [vmem:[#allocation8 + $0x2c] sm:$0xf]
        %v949 = vld [vmem:[#allocation8 + $0x30] sm:$0xf]
        %v950 = vld [vmem:[#allocation8 + $0x34] sm:$0xf]
        %v951 = vld [vmem:[#allocation8 + $0x38] sm:$0xf]
        %v952 = vld [vmem:[#allocation8 + $0x3c] sm:$0xf]
        %v953 = vld [vmem:[%s6] sm:$0x1]
        %v955 = vlaneseq
        %v956 = vshrl.u32 %v955, 7
        %v957 = vsub.s32 0, %v956
        %v958 = vrot.slane %v953, %v957
        %v976 = vunpack.c.l.b16 %v937
        %v977 = vunpack.c.l.b16 %v938
        %v978 = vunpack.c.l.b16 %v939
        %v979 = vunpack.c.l.b16 %v940
        %v980 = vunpack.c.l.b16 %v941
        %v981 = vunpack.c.l.b16 %v942
        %v982 = vunpack.c.l.b16 %v943
        %v983 = vunpack.c.l.b16 %v944
        %v984 = vunpack.c.l.b16 %v945
        %v985 = vunpack.c.l.b16 %v946
        %v986 = vunpack.c.l.b16 %v947
        %v987 = vunpack.c.l.b16 %v948
        %v988 = vunpack.c.l.b16 %v949
        %v989 = vunpack.c.l.b16 %v950
        %v990 = vunpack.c.l.b16 %v951
        %v991 = vunpack.c.l.b16 %v952
        %v992 = vpack.c.b16 %v977, %v976
        %v993 = vpack.c.b16 %v979, %v978
        %v994 = vpack.c.b16 %v981, %v980
        %v995 = vpack.c.b16 %v983, %v982
        %v996 = vpack.c.b16 %v985, %v984
        %v997 = vpack.c.b16 %v987, %v986
        %v998 = vpack.c.b16 %v989, %v988
        %v999 = vpack.c.b16 %v991, %v990
        %1008 = vmatprep.subr.bf16.mxu0 0
        %1009 = vmatpush1.bf16.msra.mxu0 %v999
        %1010 = vmatprep.subr.bf16.mxu0 0
        %1011 = vmatpush1.bf16.msra.mxu0 %v998
        %1012 = vmatprep.subr.bf16.mxu0 0
        %1013 = vmatpush1.bf16.msra.mxu0 %v997
        %1014 = vmatprep.subr.bf16.mxu0 0
        %1015 = vmatpush1.bf16.msra.mxu0 %v996
        %1016 = vmatprep.subr.bf16.mxu0 0
        %1017 = vmatpush1.bf16.msra.mxu0 %v995
        %1018 = vmatprep.subr.bf16.mxu0 0
        %1019 = vmatpush1.bf16.msra.mxu0 %v994
        %1020 = vmatprep.subr.bf16.mxu0 0
        %1021 = vmatpush1.bf16.msra.mxu0 %v993
        %1022 = vmatprep.subr.bf16.mxu0 0
        %1023 = vmatpush1.bf16.msra.mxu0 %v992
        %1024 = vmatprep.subr.bf16.mxu0 0
        %1025 = vmatpush2.bf16.msra.mxu0 0
        %1026 = vmatprep.subr.bf16.mxu0 0
        %1027 = vmatpush2.bf16.msra.mxu0 0
        %1028 = vmatprep.subr.bf16.mxu0 0
        %1029 = vmatpush2.bf16.msra.mxu0 0
        %1030 = vmatprep.subr.bf16.mxu0 0
        %1031 = vmatpush2.bf16.msra.mxu0 0
        %1032 = vmatprep.subr.bf16.mxu0 0
        %1033 = vmatpush2.bf16.msra.mxu0 0
        %1034 = vmatprep.subr.bf16.mxu0 0
        %1035 = vmatpush2.bf16.msra.mxu0 0
        %1036 = vmatprep.subr.bf16.mxu0 0
        %1037 = vmatpush2.bf16.msra.mxu0 0
        %1038 = vmatprep.subr.bf16.mxu0 0
        %1039 = vmatpush2.bf16.msra.mxu0 0
        %1040 = vmatprep.mubr.bf16.mxu0 0
        %1041 = vmatmul.mubr.bf16.gmra.mxu0 %v348
        %v1042 = vpop.f32.mrf.mxu0
        %v1043 = vadd.f32 %v958, %v1042
        %v1044 = vpop.f32.mrf.mxu0
        %v1045 = vpop.f32.mrf.mxu0
        %v1046 = vadd.f32 %v958, %v1045
        %v1047 = vpop.f32.mrf.mxu0
        %1048 = vdwg.mxu0
        %v1049 = vadd.f32 %v935, %v1043
        %v1050 = vadd.f32 %v936, %v1046
        %v1051 = vmax.f32 %v1049, 0.0
        %v1052 = vmax.f32 %v1050, 0.0
        %1053 = vst [vmem:[%s340] sm:$0xff] %v1051
        %1054 = vst [vmem:[%s340 + $0x8] sm:$0xff] %v1052
        %s1055 = sand.u32 %s186, 1
        %s1056 = scalar_lea.sflag [#allocation4], %s1055
        %s1057 = sand.u32 %s186, 1
        %s1058 = smul.addr %s1057, 16
        %s1059 = scalar_lea.vmem [#allocation10], %s1058
        // Predicated region
        $region65: #{tpu_custom_call.1} parent=47 // pred_check
          %p1060 = pneg %p196
        $region66: #{tpu_custom_call.1} parent=47 // pred_check_branch
          %1062 = sbr.rel (%p1060) target = $region68
        $region67: #{tpu_custom_call.1} parent=47 // pred_region
          %s1064 = ssub.s32 256, 256
          %1065 = vsyncadd %s1056, %s1064
          %s1066 = smul.addr %s26, 2
          %s1067 = smul.addr %s1066, 128
          %s1068 = scalar_lea.hbm %s7, %s1067
          %s1069 = sshll.u32 %s1059, 4
          %s1070 = int_to_ptr.vmem [resolvable:$true] %s1069
          %1075 = dma.vmem_to_hbm [thread:$0]  %s1070, 256, %s1068, %s1056, 128, 128, 8
        $region68: #{tpu_custom_call.1} parent=47 // pred_fallthru
          _
      $region48: #{tpu_custom_call.1} parent=5 // pred_fallthru
        _
      %p1076 = scmp.le.s32.totalorder 2, %s21
      // Predicated region
      $region69: #{tpu_custom_call.1} parent=5 // pred_check
        %p1077 = pneg %p1076
      $region70: #{tpu_custom_call.1} parent=5 // pred_check_branch
        %1079 = sbr.rel (%p1077) target = $region72
      $region71: #{tpu_custom_call.1} parent=5 // pred_region
        %s1080 = ssub.s32 %s21, 2
        // Predicated region
        $region73: #{tpu_custom_call.1} parent=71 // pred_check
          %p1081 = pneg %p202
        $region74: #{tpu_custom_call.1} parent=71 // pred_check_branch
          %1083 = sbr.rel (%p1081) target = $region76
        $region75: #{tpu_custom_call.1} parent=71 // pred_region
          %s1084 = sand.u32 %s187, 1
          %s1085 = scalar_lea.sflag [#allocation4], %s1084
          %s1086 = sand.u32 %s187, 1
          %s1087 = smul.addr %s1086, 16
          %s1088 = scalar_lea.vmem [#allocation10], %s1087
          %1089 = dma.done %s1085, 256
        $region76: #{tpu_custom_call.1} parent=71 // pred_fallthru
          _
      $region72: #{tpu_custom_call.1} parent=5 // pred_fallthru
        _
    $region6: #{tpu_custom_call.1} parent=1 // loop_footer
      %s25 = sadd.s32 1, %s21
    $region7: #{tpu_custom_call.1} parent=1 // loop_footer_branch
      %20 = sbr.rel target = $region3
    $region8: #{tpu_custom_call.1} parent=1 // loop_exit
      _
    %1090 = vsyncpa [#allocation3], 1
    %s1091 = scalar_lea.sflag [#allocation3], 1
    %1092 = vsyncpa %s1091, 1
    %1093 = vsyncpa [#allocation6], 1
    %1094 = vsyncpa [#allocation9], 1
    %1095 = vsyncpa [#allocation4], 1
    %s1096 = scalar_lea.sflag [#allocation4], 1
    %1097 = vsyncpa %s1096, 1

</llo_original>
